<compile_context>
chip_gen: v5e
topology: v5e:2x2
jax: 0.10.0
libtpu: 0.0.40
codegen_flags: <defaults>
</compile_context>

<pallas_src>
import jax
import jax.numpy as jnp
from jax.experimental import pallas as pl
from jax.experimental.pallas import tpu as pltpu


def _fused_conv_relu_kernel(w_ref, b_ref, p_ref, o_ref):
    # w_ref: (OC, CKK)   folded weights (w10 + w11), reduction order (kh, kw, c)
    # b_ref: (OC, 1)     folded bias    (b10 + b11)
    # p_ref: (CKK, TM)   im2col patches, lane axis = fused (n, oh, ow)
    # o_ref: (OC, TM)    relu(conv10(x) + conv11(x)), lane-dense
    acc = jnp.dot(w_ref[...], p_ref[...], preferred_element_type=jnp.float32)  # MXU
    acc = acc + b_ref[...]                                   # (OC, 1) broadcast on VPU
    o_ref[...] = jnp.maximum(acc, 0.0).astype(o_ref.dtype)


def _im2col_lane_major(x, K, stride):
    """x: (N, C, H, W) -> patches (K*K*C, N*OH*OW); reduction order (kh, kw, c)."""
    N, C, H, W = x.shape
    OH = (H - K) // stride + 1
    OW = (W - K) // stride + 1
    slabs = []
    for kh in range(K):
        for kw in range(K):
            s = x[:, :, kh:kh + stride * OH:stride, kw:kw + stride * OW:stride]
            # (N, C, OH, OW) -> (C, N*OH*OW); XLA fuses the 9 slices+concat into one
            # fusion writing the patch tensor (no separate 6-D transpose relayout).
            slabs.append(jnp.transpose(s, (1, 0, 2, 3)).reshape(C, N * OH * OW))
    return jnp.concatenate(slabs, axis=0), (OH, OW)


def model_forward(x, w10, b10, w11, b11, stride=2, tile_m=2048):
    """x: (N, 3, H, W) NCHW f32; w: (8, 3, 3, 3) PyTorch OIHW layout; b: (8,)."""
    OC, IC, KH, KW = w10.shape
    assert KH == KW
    N = x.shape[0]

    patches, (OH, OW) = _im2col_lane_major(x, KH, stride)
    CKK, M = patches.shape                       # M = N * OH * OW (batch fused in lanes)

    # Pad the lane axis up to a multiple of 128 so every store is a full, unmasked vst.
    M_pad = pl.cdiv(M, 128) * 128
    if M_pad != M:
        patches = jnp.pad(patches, ((0, 0), (0, M_pad - M)))

    # Fold the two convs: same input, results summed before ReLU.
    # OIHW -> (OC, KH, KW, IC) -> (OC, KH*KW*IC) matches the patch order (kh, kw, c).
    w_sum = (w10 + w11).transpose(0, 2, 3, 1).reshape(OC, CKK).astype(jnp.float32)
    b_sum = (b10 + b11).reshape(OC, 1).astype(jnp.float32)

    # Spatial tile: full (padded) extent when small, otherwise a 128-multiple tile.
    # Large problems (>tile_m lanes) get multiple "parallel" grid steps (v7x megacore).
    tm = M_pad if M_pad <= tile_m else tile_m
    grid = (pl.cdiv(M_pad, tm),)

    out = pl.pallas_call(
        _fused_conv_relu_kernel,
        out_shape=jax.ShapeDtypeStruct((OC, M_pad), jnp.float32),
        grid_spec=pltpu.PrefetchScalarGridSpec(
            num_scalar_prefetch=0,
            grid=grid,
            in_specs=[
                pl.BlockSpec((OC, CKK), lambda m: (0, 0)),   # folded weights (resident)
                pl.BlockSpec((OC, 1), lambda m: (0, 0)),     # folded bias
                pl.BlockSpec((CKK, tm), lambda m: (0, m)),   # patch lane-tile
            ],
            out_specs=pl.BlockSpec((OC, tm), lambda m: (0, m)),
        ),
        compiler_params=pltpu.CompilerParams(
            dimension_semantics=("parallel",)),
    )(w_sum, b_sum, patches)

    # Drop pad lanes, then (OC, N*OH*OW) -> (N, OC, OH, OW) (tiny output relayout;
    # free when N == 1, which is the module's nominal batch size).
    out = out[:, :M].reshape(OC, N, OH, OW)
    return jnp.transpose(out, (1, 0, 2, 3))


def _reference(x, w10, b10, w11, b11, stride=2):
    dn = jax.lax.conv_dimension_numbers(x.shape, w10.shape, ("NCHW", "OIHW", "NCHW"))
    v8 = jax.lax.conv_general_dilated(x, w10, (stride, stride), "VALID",
                                      dimension_numbers=dn) + b10[None, :, None, None]
    v9 = jax.lax.conv_general_dilated(x, w11, (stride, stride), "VALID",
                                      dimension_numbers=dn) + b11[None, :, None, None]
    return jnp.maximum(v8 + v9, 0.0)


if __name__ == "__main__":
    key = jax.random.PRNGKey(0)
    kx, kw10, kb10, kw11, kb11 = jax.random.split(key, 5)

    # Small shapes consistent with the module: N=2, C_in=3, H=W=16 -> OH=OW=7.
    x = jax.random.normal(kx, (2, 3, 16, 16), dtype=jnp.float32)

    # Conv2d(3, 8, 3) parameter shapes from __init__, deterministic init.
    w10 = jax.random.normal(kw10, (8, 3, 3, 3), dtype=jnp.float32) * 0.1
    b10 = jax.random.normal(kb10, (8,), dtype=jnp.float32) * 0.1
    w11 = jax.random.normal(kw11, (8, 3, 3, 3), dtype=jnp.float32) * 0.1
    b11 = jax.random.normal(kb11, (8,), dtype=jnp.float32) * 0.1

    out = jax.block_until_ready(model_forward(x, w10, b10, w11, b11))

    ref = jax.block_until_ready(_reference(x, w10, b10, w11, b11))
    assert out.shape == (2, 8, 7, 7), out.shape
    assert jnp.allclose(out, ref, atol=1e-4, rtol=1e-4), float(jnp.max(jnp.abs(out - ref)))

    print("KERNEL_OK")
</pallas_src>

<mosaic_0001>
module attributes {stable_mosaic.version = 11 : i64} {
  func.func @_fused_conv_relu_kernel(%arg0: i32, %arg1: memref<8x27xf32, #tpu.memory_space<vmem>>, %arg2: memref<8x1xf32, #tpu.memory_space<vmem>>, %arg3: memref<27x128xf32, #tpu.memory_space<vmem>>, %arg4: memref<8x128xf32, #tpu.memory_space<vmem>>) attributes {dimension_semantics = [#tpu.dimension_semantics<parallel>], iteration_bounds = array<i64: 1>, scalar_prefetch = 0 : i64, scratch_operands = 0 : i64, tpu.core_type = #tpu.core_type<tc>, window_params = [{pipeline_mode = #tpu.pipeline_mode<synchronous>, transform_indices = @transform_0, window_bounds = array<i64: 8, 27>}, {pipeline_mode = #tpu.pipeline_mode<synchronous>, transform_indices = @transform_1, window_bounds = array<i64: 8, 1>}, {transform_indices = @transform_2, window_bounds = array<i64: 27, 128>}, {transform_indices = @transform_3, window_bounds = array<i64: 8, 128>}]} {
    %c0 = arith.constant 0 : index
    %c0_0 = arith.constant 0 : index
    %0 = vector.load %arg1[%c0, %c0_0] : memref<8x27xf32, #tpu.memory_space<vmem>>, vector<8x27xf32>
    %c0_1 = arith.constant 0 : index
    %c0_2 = arith.constant 0 : index
    %1 = vector.load %arg3[%c0_1, %c0_2] : memref<27x128xf32, #tpu.memory_space<vmem>>, vector<27x128xf32>
    %cst = arith.constant dense<0.000000e+00> : vector<8x128xf32>
    %2 = tpu.matmul %0, %1, %cst {dimension_numbers = #tpu.dot_dimension_numbers<[1], [0], [0], [1], [0, 0, 1, 1], [], []>} : vector<8x27xf32>, vector<27x128xf32>, vector<8x128xf32> -> vector<8x128xf32>
    %c0_3 = arith.constant 0 : index
    %c0_4 = arith.constant 0 : index
    %3 = vector.load %arg2[%c0_3, %c0_4] : memref<8x1xf32, #tpu.memory_space<vmem>>, vector<8x1xf32>
    %4 = vector.broadcast %3 : vector<8x1xf32> to vector<8x128xf32>
    %5 = arith.addf %2, %4 : vector<8x128xf32>
    %cst_5 = arith.constant 0.000000e+00 : f32
    %6 = vector.broadcast %cst_5 : f32 to vector<8x128xf32>
    %7 = arith.maximumf %5, %6 : vector<8x128xf32>
    %c0_6 = arith.constant 0 : index
    %c0_7 = arith.constant 0 : index
    %8 = vector.load %arg4[%c0_6, %c0_7] : memref<8x128xf32, #tpu.memory_space<vmem>>, vector<8x128xf32>
    tpu.vector_store %arg4[%c0_6, %c0_7], %7 {strides = array<i32>} : memref<8x128xf32, #tpu.memory_space<vmem>>, vector<8x128xf32>,
    return
  }
  func.func @transform_0(%arg0: i32) -> (i32, i32) {
    %c0_i32 = arith.constant 0 : i32
    %c0_i32_0 = arith.constant 0 : i32
    %c0_i32_1 = arith.constant 0 : i32
    return %c0_i32, %c0_i32_0 : i32, i32
  }
  func.func @transform_1(%arg0: i32) -> (i32, i32) {
    %c0_i32 = arith.constant 0 : i32
    %c0_i32_0 = arith.constant 0 : i32
    %c0_i32_1 = arith.constant 0 : i32
    return %c0_i32, %c0_i32_0 : i32, i32
  }
  func.func @transform_2(%arg0: i32) -> (i32, i32) {
    %c0_i32 = arith.constant 0 : i32
    %c0_i32_0 = arith.constant 0 : i32
    return %c0_i32, %arg0 : i32, i32
  }
  func.func @transform_3(%arg0: i32) -> (i32, i32) {
    %c0_i32 = arith.constant 0 : i32
    %c0_i32_0 = arith.constant 0 : i32
    return %c0_i32, %arg0 : i32, i32
  }
}

</mosaic_0001>

<llo_original>
// kernel: tpu_custom_call.1
$region0: #{tpu_custom_call.1}
  #allocation0 [shape = 'u32[]', space=smem, size = 0x4, offset = 0x4, fixed_abs, tag = 'smem constant byte address 0x4 - core index']
  #allocation1 [shape = 'u32[72,128]{1,0:T(1,128)}', space=vmem, size = 0x9000, scoped, tag = 'internal scratch']
  %s0 = inlined_call_operand.vmem [shape: f32[8,27], index: 0, kind: input, shape index: {}]
  %s1 = inlined_call_operand.vmem [shape: f32[8,1], index: 1, kind: input, shape index: {}]
  %s2 = inlined_call_operand.hbm [shape: f32[27,128], index: 2, kind: input, shape index: {}]
  %s3 = inlined_call_operand.hbm [shape: f32[8,128], index: 3, kind: output, shape index: {}]
  %s4 = sld [smem:[#allocation0]]
  $region26: #{tpu_custom_call.1} parent=0
    _
  %s6 = ssub.s32 1, %s4
  %s7 = scalar_select 0, %s6, %s4
  $region1: #{tpu_custom_call.1} parent=0
    #allocation2 [shape = 'u8[16384]{0}', space=vmem, size = 0x4000, scoped, tag = 'input window, operand 2, single buffered']
    #allocation3 [shape = 's32[1]{0}', space=sflag, size = 0x4, scoped, tag = 'scoped memory for tpu_custom_call.1']
    #allocation4 [shape = 's32[1]{0}', space=sflag, size = 0x4, scoped, tag = 'scoped memory for tpu_custom_call.1']
    #allocation5 [shape = 'u8[4096]{0}', space=vmem, size = 0x1000, scoped, tag = 'output window, operand 0, single buffered']
    %8 = vsyncpa [#allocation3], 0
    %9 = vsyncpa [#allocation4], 0
    // Predicated region
    $region2: #{tpu_custom_call.1} parent=1 // pred_check
      _
    $region3: #{tpu_custom_call.1} parent=1 // pred_check_branch
      %11 = sbr.rel (0) target = $region5
    $region4: #{tpu_custom_call.1} parent=1 // pred_region
      _
    $region5: #{tpu_custom_call.1} parent=1 // pred_fallthru
      _
    // Predicated region
    $region6: #{tpu_custom_call.1} parent=1 // pred_check
      _
    $region7: #{tpu_custom_call.1} parent=1 // pred_check_branch
      %13 = sbr.rel (0) target = $region9
    $region8: #{tpu_custom_call.1} parent=1 // pred_region
      _
    $region9: #{tpu_custom_call.1} parent=1 // pred_fallthru
      _
    // Predicated region
    $region10: #{tpu_custom_call.1} parent=1 // pred_check
      _
    $region11: #{tpu_custom_call.1} parent=1 // pred_check_branch
      %15 = sbr.rel (0) target = $region13
    $region12: #{tpu_custom_call.1} parent=1 // pred_region
      %17 = vsyncadd [#allocation3], 0
      %s18 = sshll.u32 %s2, 4
      %s19 = int_to_ptr.hbm [resolvable:$true] %s18
      %s20 = sshll.u32 [#allocation2], 4
      %s21 = int_to_ptr.vmem [resolvable:$true] %s20
      %26 = dma.hbm_to_vmem [thread:$0]  %s19, 512, %s21, [#allocation3], 128, 128, 8
    $region13: #{tpu_custom_call.1} parent=1 // pred_fallthru
      _
    // Predicated region
    $region14: #{tpu_custom_call.1} parent=1 // pred_check
      _
    $region15: #{tpu_custom_call.1} parent=1 // pred_check_branch
      %28 = sbr.rel (0) target = $region17
    $region16: #{tpu_custom_call.1} parent=1 // pred_region
      %30 = dma.done [#allocation3], 512
    $region17: #{tpu_custom_call.1} parent=1 // pred_fallthru
      _
    %v31 = vld [vmem:[%s0] sm:$0xff]
    %v32 = vld [vmem:[#allocation2] sm:$0xff]
    %v33 = vld [vmem:[#allocation2 + $0x8] sm:$0xff]
    %v34 = vld [vmem:[#allocation2 + $0x10] sm:$0xff]
    %v35 = vld [vmem:[#allocation2 + $0x18] sm:$0x7]
    %v36 = vld [vmem:[%s1] sm:$0xff]
    %38 = vset.pattern.permute.xlu0 0
    %39 = vperm.xlu0 %38, %v36
    %v40 = vpop.permute.xlu0 %39
    %vm42 = vcmask 220160
    %v44 = vsel %vm42, %v31, 0
    %vm46 = vcmask 1042432
    %v48 = vsel %vm46, %v35, 0
    %50 = vmatpush.msra.mxu0 0.0
    %51 = vmatpush.msra.mxu0 0.0
    %52 = vmatpush.msra.mxu0 0.0
    %53 = vmatpush.msra.mxu0 0.0
    %54 = vmatpush.msra.mxu0 0.0
    %55 = vmatpush.msra.mxu0 0.0
    %56 = vmatpush.msra.mxu0 0.0
    %57 = vmatpush.msra.mxu0 0.0
    %58 = vmatpush.msra.mxu0 0.0
    %59 = vmatpush.msra.mxu0 0.0
    %60 = vmatpush.msra.mxu0 0.0
    %61 = vmatpush.msra.mxu0 0.0
    %62 = vmatpush.msra.mxu0 %v48
    %63 = vmatpush.msra.mxu0 %v34
    %64 = vmatpush.msra.mxu0 %v33
    %65 = vmatpush.msra.mxu0 %v32
    %66 = vmatmul.f32.gmra.mxu0 %v44
    %v67 = vpop.f32.mrf.mxu0
    %v68 = vadd.f32 %v40, %v67
    %69 = vdwg.mxu0
    %v70 = vmax.f32 %v68, 0.0
    %71 = vst [vmem:[#allocation5] sm:$0xff] %v70
    // Predicated region
    $region18: #{tpu_custom_call.1} parent=1 // pred_check
      _
    $region19: #{tpu_custom_call.1} parent=1 // pred_check_branch
      %73 = sbr.rel (0) target = $region21
    $region20: #{tpu_custom_call.1} parent=1 // pred_region
      %75 = vsyncadd [#allocation4], 0
      %s77 = sshll.u32 [#allocation5], 4
      %s78 = int_to_ptr.vmem [resolvable:$true] %s77
      %s79 = sshll.u32 %s3, 4
      %s80 = int_to_ptr.hbm [resolvable:$true] %s79
      %82 = dma.vmem_to_hbm [thread:$0]  %s78, 128, %s80, [#allocation4]
    $region21: #{tpu_custom_call.1} parent=1 // pred_fallthru
      _
    // Predicated region
    $region22: #{tpu_custom_call.1} parent=1 // pred_check
      _
    $region23: #{tpu_custom_call.1} parent=1 // pred_check_branch
      %84 = sbr.rel (0) target = $region25
    $region24: #{tpu_custom_call.1} parent=1 // pred_region
      %86 = dma.done [#allocation4], 128
    $region25: #{tpu_custom_call.1} parent=1 // pred_fallthru
      _
    %87 = vsyncpa [#allocation3], 1
    %88 = vsyncpa [#allocation4], 1

</llo_original>
